<compile_context>
chip_gen: v5e
topology: v5e:2x2
jax: 0.10.0
libtpu: 0.0.40
codegen_flags: <defaults>
</compile_context>

<pallas_src>
import functools

import jax
import jax.numpy as jnp
from jax import lax
from jax.experimental import pallas as pl
from jax.experimental.pallas import tpu as pltpu


def _round_up(x, m):
    return ((x + m - 1) // m) * m


def _frn_kernel(x_ref, gamma_ref, beta_ref, eps_ref, o_ref, *,
                inv_hw, tile_rows, resident_params):
    # x_ref:     (tile_rows, HWp)   one row per (n, c); HWp is lane-padded
    # gamma_ref: (R, 1) resident    OR (tile_rows, 1) tiled
    # beta_ref:  same as gamma_ref
    # eps_ref:   (1,) in SMEM
    x = x_ref[...].astype(jnp.float32)

    # Sum of squares divided by the TRUE spatial size: the lane padding is
    # zero, so it contributes nothing to the sum and nu2 matches jnp.mean
    # over the un-padded H*W.
    nu2 = jnp.sum(x * x, axis=-1, keepdims=True) * inv_hw
    inv = lax.rsqrt(nu2 + jnp.abs(eps_ref[0]))

    if resident_params:
        r0 = pl.multiple_of(pl.program_id(0) * tile_rows, tile_rows)
        gamma = gamma_ref[pl.ds(r0, tile_rows), :]
        beta = beta_ref[pl.ds(r0, tile_rows), :]
    else:
        gamma = gamma_ref[...]
        beta = beta_ref[...]

    y = gamma.astype(jnp.float32) * (x * inv) + beta.astype(jnp.float32)
    o_ref[...] = y.astype(o_ref.dtype)


@jax.jit
def frn_forward(x, weight, bias, eps):
    """x: (N, C, H, W); weight/bias: (1, C, 1, 1); eps: scalar-like."""
    N, C, H, W = x.shape
    NC, HW = N * C, H * W
    itemsize = jnp.dtype(x.dtype).itemsize

    # Sublane-packing alignment for the row axis (f32:8, bf16:16, int8/fp8:32).
    row_align = {4: 8, 2: 16, 1: 32}.get(itemsize, 8)

    # Lane-dense spatial axis: pad HW up to a multiple of 128 so the output
    # stores are full-width vst (no masked partial stores).
    HWp = _round_up(HW, 128)

    # ---- Tile-row selection (mem-bound: biggest tile that fits the budget).
    # Budget ~32 MiB for the double-buffered in/out pipeline buffers; safe on
    # every generation including v7x (64 MiB physical VMEM per TC).
    budget = 32 * 1024 * 1024
    per_row = HWp * itemsize * 4            # 2 bufs x (input + output) per row
    tile_rows = (budget // per_row) // row_align * row_align
    tile_rows = max(row_align, min(tile_rows, 1024))
    tile_rows = min(tile_rows, _round_up(NC, row_align))
    # Keep >= 2 grid steps when possible so the "parallel" axis can be split
    # across the two TensorCores on v7x megacore.
    if tile_rows >= NC and NC > row_align:
        tile_rows = _round_up(-(-NC // 2), row_align)

    R = _round_up(NC, tile_rows)            # padded row count
    grid = (R // tile_rows,)

    # ---- Build kernel operands (pad rows / lanes with zeros; sliced off later).
    x2 = x.reshape(NC, HW)
    pad_r, pad_c = R - NC, HWp - HW
    if pad_r or pad_c:
        x2 = jnp.pad(x2, ((0, pad_r), (0, pad_c)))

    # Per-channel params broadcast to one value per (n, c) row.
    gamma = jnp.broadcast_to(weight.reshape(1, C), (N, C)).reshape(NC, 1)
    beta = jnp.broadcast_to(bias.reshape(1, C), (N, C)).reshape(NC, 1)
    if pad_r:
        gamma = jnp.pad(gamma, ((0, pad_r), (0, 0)))
        beta = jnp.pad(beta, ((0, pad_r), (0, 0)))

    eps_arr = jnp.reshape(eps, (1,)).astype(jnp.float32)

    # Keep gamma/beta resident in VMEM (one DMA total) unless the lane-padded
    # resident copy would be large; then fall back to small per-step tiles.
    resident_bytes = 2 * 2 * R * 128 * 4            # 2 arrays x 2 bufs, lane-padded f32
    resident_params = resident_bytes <= (4 << 20)
    if resident_params:
        param_spec = pl.BlockSpec((R, 1), lambda i: (0, 0))
        param_bytes = resident_bytes
    else:
        param_spec = pl.BlockSpec((tile_rows, 1), lambda i: (i, 0))
        param_bytes = 2 * 2 * tile_rows * 128 * 4

    # Explicit scoped-VMEM limit sized from the actual working set (the
    # default scoped limit is only 16/32 MiB and would block large tiles).
    pipeline_bytes = 2 * tile_rows * HWp * itemsize * 2
    vmem_limit = pipeline_bytes + param_bytes + (4 << 20)
    vmem_limit = int(min(max(vmem_limit, 32 << 20), 96 << 20))
    # TODO(synk): for extremely large H*W (full-HW row block no longer fits
    # VMEM even at the minimum tile_rows, hits first on v7x), switch to a
    # chunked-HW second grid axis with a sum-of-squares accumulator.

    kernel = functools.partial(
        _frn_kernel,
        inv_hw=float(1.0 / HW),
        tile_rows=tile_rows,
        resident_params=resident_params,
    )

    out = pl.pallas_call(
        kernel,
        out_shape=jax.ShapeDtypeStruct((R, HWp), x.dtype),
        grid=grid,
        in_specs=[
            pl.BlockSpec((tile_rows, HWp), lambda i: (i, 0)),
            param_spec,
            param_spec,
            pl.BlockSpec(memory_space=pltpu.SMEM),
        ],
        out_specs=pl.BlockSpec((tile_rows, HWp), lambda i: (i, 0)),
        compiler_params=pltpu.CompilerParams(
            dimension_semantics=("parallel",),
            vmem_limit_bytes=vmem_limit,
        ),
    )(x2, gamma, beta, eps_arr)

    return out[:NC, :HW].reshape(N, C, H, W)


def frn_reference(x, weight, bias, eps):
    xf = x.astype(jnp.float32)
    nu2 = jnp.mean(xf * xf, axis=(2, 3), keepdims=True)
    y = xf * lax.rsqrt(nu2 + jnp.abs(eps))
    y = weight * y + bias
    return y.astype(x.dtype)


if __name__ == "__main__":
    key = jax.random.PRNGKey(0)

    # --- Case 1: shapes/params matching FRN(num_features=4).reset_parameters()
    N, C, H, W = 2, 4, 16, 16
    k1, k2, k3, k4 = jax.random.split(key, 4)
    x = jax.random.normal(k1, (N, C, H, W), dtype=jnp.float32)
    weight = jnp.ones((1, C, 1, 1), dtype=jnp.float32)
    bias = jnp.zeros((1, C, 1, 1), dtype=jnp.float32)
    eps = jnp.array([1e-6], dtype=jnp.float32)

    out = jax.block_until_ready(frn_forward(x, weight, bias, eps))
    ref = frn_reference(x, weight, bias, eps)
    assert out.shape == x.shape and out.dtype == x.dtype
    assert jnp.allclose(out, ref, atol=1e-5, rtol=1e-5), "mismatch vs reference (case 1)"

    # --- Case 2: non-trivial scale/bias and HW not a multiple of 128
    #     (exercises the lane-padding + resident-param path).
    N2, C2, H2, W2 = 2, 3, 7, 7
    x2 = jax.random.normal(k2, (N2, C2, H2, W2), dtype=jnp.float32)
    w2 = jax.random.normal(k3, (1, C2, 1, 1), dtype=jnp.float32)
    b2 = jax.random.normal(k4, (1, C2, 1, 1), dtype=jnp.float32)

    out2 = jax.block_until_ready(frn_forward(x2, w2, b2, eps))
    ref2 = frn_reference(x2, w2, b2, eps)
    assert out2.shape == x2.shape and out2.dtype == x2.dtype
    assert jnp.allclose(out2, ref2, atol=1e-5, rtol=1e-5), "mismatch vs reference (case 2)"

    print("KERNEL_OK")
</pallas_src>

<mosaic_0001>
module attributes {stable_mosaic.version = 11 : i64} {
  func.func @_frn_kernel(%arg0: i32, %arg1: memref<8x256xf32, #tpu.memory_space<vmem>>, %arg2: memref<8x1xf32, #tpu.memory_space<vmem>>, %arg3: memref<8x1xf32, #tpu.memory_space<vmem>>, %arg4: memref<1xf32, #tpu.memory_space<smem>>, %arg5: memref<8x256xf32, #tpu.memory_space<vmem>>) attributes {dimension_semantics = [#tpu.dimension_semantics<parallel>], iteration_bounds = array<i64: 1>, scalar_prefetch = 0 : i64, scratch_operands = 0 : i64, tpu.core_type = #tpu.core_type<tc>, window_params = [{transform_indices = @transform_0, window_bounds = array<i64: 8, 256>}, {pipeline_mode = #tpu.pipeline_mode<synchronous>, transform_indices = @transform_1, window_bounds = array<i64: 8, 1>}, {pipeline_mode = #tpu.pipeline_mode<synchronous>, transform_indices = @transform_2, window_bounds = array<i64: 8, 1>}, {transform_indices = @transform_3, window_bounds = array<i64: 1>}, {transform_indices = @transform_4, window_bounds = array<i64: 8, 256>}]} {
    %c0 = arith.constant 0 : index
    %c0_0 = arith.constant 0 : index
    %0 = vector.load %arg1[%c0, %c0_0] : memref<8x256xf32, #tpu.memory_space<vmem>>, vector<8x256xf32>
    %1 = arith.mulf %0, %0 : vector<8x256xf32>
    %cst = arith.constant dense<0.000000e+00> : vector<8xf32>
    %2 = vector.multi_reduction <add>, %1, %cst [1] : vector<8x256xf32> to vector<8xf32>
    %3 = vector.shape_cast %2 : vector<8xf32> to vector<8x1xf32>
    %cst_1 = arith.constant 3.906250e-03 : f32
    %4 = vector.broadcast %cst_1 : f32 to vector<8x1xf32>
    %5 = arith.mulf %3, %4 : vector<8x1xf32>
    %c0_2 = arith.constant 0 : index
    %6 = memref.load %arg4[%c0_2] : memref<1xf32, #tpu.memory_space<smem>>
    %7 = math.absf %6 : f32
    %8 = vector.broadcast %7 : f32 to vector<8x1xf32>
    %9 = arith.addf %5, %8 : vector<8x1xf32>
    %10 = math.rsqrt %9 : vector<8x1xf32>
    %c8_i32 = arith.constant 8 : i32
    %11 = arith.muli %arg0, %c8_i32 : i32
    %12 = tpu.assume_multiple %11, 8 : i32
    %13 = arith.index_cast %12 : i32 to index
    %c0_3 = arith.constant 0 : index
    %14 = vector.load %arg2[%13, %c0_3] : memref<8x1xf32, #tpu.memory_space<vmem>>, vector<8x1xf32>
    %15 = arith.index_cast %12 : i32 to index
    %c0_4 = arith.constant 0 : index
    %16 = vector.load %arg3[%15, %c0_4] : memref<8x1xf32, #tpu.memory_space<vmem>>, vector<8x1xf32>
    %17 = vector.broadcast %10 : vector<8x1xf32> to vector<8x256xf32>
    %18 = arith.mulf %0, %17 : vector<8x256xf32>
    %19 = vector.broadcast %14 : vector<8x1xf32> to vector<8x256xf32>
    %20 = arith.mulf %19, %18 : vector<8x256xf32>
    %21 = vector.broadcast %16 : vector<8x1xf32> to vector<8x256xf32>
    %22 = arith.addf %20, %21 : vector<8x256xf32>
    %c0_5 = arith.constant 0 : index
    %c0_6 = arith.constant 0 : index
    %23 = vector.load %arg5[%c0_5, %c0_6] : memref<8x256xf32, #tpu.memory_space<vmem>>, vector<8x256xf32>
    tpu.vector_store %arg5[%c0_5, %c0_6], %22 {strides = array<i32>} : memref<8x256xf32, #tpu.memory_space<vmem>>, vector<8x256xf32>,
    return
  }
  func.func @transform_0(%arg0: i32) -> (i32, i32) {
    %c0_i32 = arith.constant 0 : i32
    %c0_i32_0 = arith.constant 0 : i32
    return %arg0, %c0_i32 : i32, i32
  }
  func.func @transform_1(%arg0: i32) -> (i32, i32) {
    %c0_i32 = arith.constant 0 : i32
    %c0_i32_0 = arith.constant 0 : i32
    %c0_i32_1 = arith.constant 0 : i32
    return %c0_i32, %c0_i32_0 : i32, i32
  }
  func.func @transform_2(%arg0: i32) -> (i32, i32) {
    %c0_i32 = arith.constant 0 : i32
    %c0_i32_0 = arith.constant 0 : i32
    %c0_i32_1 = arith.constant 0 : i32
    return %c0_i32, %c0_i32_0 : i32, i32
  }
  func.func @transform_3(%arg0: i32) -> i32 {
    %c0_i32 = arith.constant 0 : i32
    %c0_i32_0 = arith.constant 0 : i32
    return %c0_i32 : i32
  }
  func.func @transform_4(%arg0: i32) -> (i32, i32) {
    %c0_i32 = arith.constant 0 : i32
    %c0_i32_0 = arith.constant 0 : i32
    return %arg0, %c0_i32 : i32, i32
  }
}

</mosaic_0001>

<llo_original>
// kernel: frn_forward.1
$region0: #{frn_forward.1}
  #allocation0 [shape = 'u32[]', space=smem, size = 0x4, offset = 0x4, fixed_abs, tag = 'smem constant byte address 0x4 - core index']
  #allocation1 [shape = 'u32[72,128]{1,0:T(1,128)}', space=vmem, size = 0x9000, scoped, tag = 'internal scratch']
  #allocation2 [shape = 'f32[1]{0:T(128)S(6)}', space=smem, size = 0x200, scoped, tag = 'scoped memory for frn_forward.1']
  %s0 = inlined_call_operand.vmem [shape: f32[8,256], index: 0, kind: input, shape index: {}]
  %s1 = inlined_call_operand.vmem [shape: f32[8,1], index: 1, kind: input, shape index: {}]
  %s2 = inlined_call_operand.vmem [shape: f32[8,1], index: 2, kind: input, shape index: {}]
  %s3 = inlined_call_operand.<no memory space> [shape: f32[1], index: 3, kind: input, shape index: {}]
  %s4 = inlined_call_operand.vmem [shape: f32[8,256], index: 4, kind: output, shape index: {}]
  %s5 = sld [smem:[#allocation0]]
  $region26: #{frn_forward.1} parent=0
    _
  %s7 = ssub.s32 1, %s5
  %s8 = scalar_select 0, %s7, %s5
  %9 = sst [smem:[#allocation2]] %s3
  // Predicated region
  $region2: #{frn_forward.1} parent=0 // pred_check
    _
  $region3: #{frn_forward.1} parent=0 // pred_check_branch
    %11 = sbr.rel (0) target = $region5
  $region4: #{frn_forward.1} parent=0 // pred_region
    _
  $region5: #{frn_forward.1} parent=0 // pred_fallthru
    _
  // Predicated region
  $region6: #{frn_forward.1} parent=0 // pred_check
    _
  $region7: #{frn_forward.1} parent=0 // pred_check_branch
    %13 = sbr.rel (0) target = $region9
  $region8: #{frn_forward.1} parent=0 // pred_region
    _
  $region9: #{frn_forward.1} parent=0 // pred_fallthru
    _
  // Predicated region
  $region10: #{frn_forward.1} parent=0 // pred_check
    _
  $region11: #{frn_forward.1} parent=0 // pred_check_branch
    %15 = sbr.rel (0) target = $region13
  $region12: #{frn_forward.1} parent=0 // pred_region
    _
  $region13: #{frn_forward.1} parent=0 // pred_fallthru
    _
  // Predicated region
  $region14: #{frn_forward.1} parent=0 // pred_check
    _
  $region15: #{frn_forward.1} parent=0 // pred_check_branch
    %17 = sbr.rel (0) target = $region17
  $region16: #{frn_forward.1} parent=0 // pred_region
    _
  $region17: #{frn_forward.1} parent=0 // pred_fallthru
    _
  %v18 = vld [vmem:[%s0] sm:$0xff]
  %v19 = vld [vmem:[%s0 + $0x8] sm:$0xff]
  %v20 = vmul.f32 %v18, %v18
  %v21 = vmul.f32 %v19, %v19
  %v22 = vadd.f32 %v20, %v21
  %23 = vadd.xlane.f32.xlu0 %v22
  %v24 = vpop.xlane.xlu0 %23
  %v25 = vmul.f32 %v24, 0.00390625
  %s26 = sld [smem:[#allocation2]]
  %s27 = sand.u32 2147483647, %s26
  %v28 = vstv %s27
  %v29 = vadd.f32 %v25, %v28
  %v30 = vrsqrt.pop %v29
  %v31 = vmul.f32 %v30, %v29
  %v32 = vmul.f32 %v31, %v30
  %v33 = vmul.f32 0.5, %v32
  %v34 = vsub.f32 1.5, %v33
  %v35 = vmul.f32 %v30, %v34
  %vm36 = vweird.f32 %v29
  %vm37 = vweird.f32 %v30
  %vm38 = vmor %vm36, %vm37
  %v39 = vsel %vm38, %v30, %v35
  %s40 = smul.u32 0, 8
  %s41 = scalar_lea.vmem %s1, %s40
  %v42 = vld [vmem:[%s41] sm:$0xff]
  %s43 = scalar_lea.vmem %s2, %s40
  %v44 = vld [vmem:[%s43] sm:$0xff]
  %v45 = vmul.f32 %v18, %v39
  %v46 = vmul.f32 %v19, %v39
  %48 = vset.pattern.permute.xlu0 0
  %49 = vperm.xlu0 %48, %v42
  %v50 = vpop.permute.xlu0 %49
  %v52 = vmul.f32 %v50, %v45
  %v53 = vmul.f32 %v50, %v46
  %55 = vset.pattern.permute.xlu0 0
  %56 = vperm.xlu0 %55, %v44
  %v57 = vpop.permute.xlu0 %56
  %v59 = vadd.f32 %v52, %v57
  %v60 = vadd.f32 %v53, %v57
  %61 = vst [vmem:[%s4] sm:$0xff] %v59
  %62 = vst [vmem:[%s4 + $0x8] sm:$0xff] %v60
  // Predicated region
  $region18: #{frn_forward.1} parent=0 // pred_check
    _
  $region19: #{frn_forward.1} parent=0 // pred_check_branch
    %64 = sbr.rel (0) target = $region21
  $region20: #{frn_forward.1} parent=0 // pred_region
    _
  $region21: #{frn_forward.1} parent=0 // pred_fallthru
    _
  // Predicated region
  $region22: #{frn_forward.1} parent=0 // pred_check
    _
  $region23: #{frn_forward.1} parent=0 // pred_check_branch
    %66 = sbr.rel (0) target = $region25
  $region24: #{frn_forward.1} parent=0 // pred_region
    _
  $region25: #{frn_forward.1} parent=0 // pred_fallthru
    _

</llo_original>
